<compile_context>
chip_gen: v7x
topology: tpu7x:2x2x1
jax: 0.10.0
libtpu: 0.0.40
codegen_flags: <defaults>
</compile_context>

<pallas_src>
import functools

import jax
import jax.numpy as jnp
from jax.experimental import pallas as pl
from jax.experimental.pallas import tpu as pltpu

IN_DIM = 28 * 28   # 784
HID = 64
LATENT = 3
SUBLANE = 16       # bf16-native sublane tile; also a valid multiple for f32 (8)


def _round_up(x, m):
    return (x + m - 1) // m * m


def simplenet_kernel(x_ref,
                     w1_ref, b1_ref,
                     w23_ref, b23_ref,
                     w4_ref, b4_ref,
                     out_ref):
    """Full forward pass for one batch tile, entirely in VMEM.

    Matmul operands are whatever dtype the wrapper streamed (bf16 by default);
    accumulation, bias-add and ReLU happen in f32.
    """
    x = x_ref[...]                                                        # (TB, 784)

    # encoder Linear(784, 64) + ReLU
    h1 = jnp.dot(x, w1_ref[...], preferred_element_type=jnp.float32)     # (TB, 64) f32
    h1 = jnp.maximum(h1 + b1_ref[...], 0.0)

    # fused encoder Linear(64,3) + decoder Linear(3,64) (no nonlinearity between),
    # followed by the decoder ReLU
    h1 = h1.astype(w23_ref.dtype)
    h2 = jnp.dot(h1, w23_ref[...], preferred_element_type=jnp.float32)   # (TB, 64) f32
    h2 = jnp.maximum(h2 + b23_ref[...], 0.0)

    # decoder Linear(64, 784)
    h2 = h2.astype(w4_ref.dtype)
    y = jnp.dot(h2, w4_ref[...], preferred_element_type=jnp.float32)     # (TB, 784) f32
    y = y + b4_ref[...]

    out_ref[...] = y.astype(out_ref.dtype)


@functools.partial(jax.jit, static_argnames=("batch_tile", "compute_dtype"))
def simplenet_forward(x, params, batch_tile=512, compute_dtype=jnp.bfloat16):
    """decoder(encoder(x)); output dtype == compute_dtype (bf16 by default).

    Activations and weights are streamed in `compute_dtype` (halves the HBM
    traffic of this bandwidth-bound kernel); biases and all accumulation are
    f32.  Pass compute_dtype=jnp.float32 for an exact-semantics path.
    """
    B, D = x.shape
    assert D == IN_DIM

    w1, b1, w2, b2, w3, b3, w4, b4 = params

    # Algebraic fusion of the latent stage (z is never returned by forward()):
    #   h2 = relu((h1 @ w2 + b2) @ w3 + b3) = relu(h1 @ (w2 @ w3) + (b2 @ w3 + b3))
    # computed in f32, then cast once for streaming.
    w23 = jnp.dot(w2.astype(jnp.float32), w3.astype(jnp.float32))        # (64, 64)
    b23 = jnp.dot(b2.astype(jnp.float32), w3.astype(jnp.float32)) + b3   # (1, 64)

    x_c = x.astype(compute_dtype)
    w1_c = w1.astype(compute_dtype)
    w23_c = w23.astype(compute_dtype)
    w4_c = w4.astype(compute_dtype)
    b1_f = b1.astype(jnp.float32)
    b23_f = b23.astype(jnp.float32)
    b4_f = b4.astype(jnp.float32)

    # Batch tiling:
    #  * tile rows a multiple of 16 (bf16 sublane packing; also fine for f32),
    #  * at most batch_tile,
    #  * at least ~4 grid steps when the batch allows it (>= 2 per v7x core).
    tb = min(batch_tile, _round_up(pl.cdiv(B, 4), SUBLANE))
    tb = max(_round_up(tb, SUBLANE), SUBLANE)
    grid = (pl.cdiv(B, tb),)   # partial last block handled by Pallas masking

    def rep(shape):            # grid-constant (replicated) weight/bias block
        return pl.BlockSpec(shape, lambda i: (0,) * len(shape))

    itemsize_act = x_c.dtype.itemsize
    param_bytes = sum(int(p.size) * p.dtype.itemsize
                      for p in (w1_c, b1_f, w23_c, b23_f, w4_c, b4_f))
    flops = 2 * B * (IN_DIM * HID + HID * HID + HID * IN_DIM)
    bytes_accessed = 2 * B * IN_DIM * itemsize_act + param_bytes
    cost = pl.CostEstimate(flops=flops, transcendentals=0,
                           bytes_accessed=bytes_accessed)

    # VMEM budget: double-buffered x/out tiles + resident params + f32 temps.
    tile_bytes = 2 * 2 * tb * IN_DIM * itemsize_act       # in + out, double-buffered
    temp_bytes = tb * IN_DIM * 4                          # f32 y before the store cast
    vmem_limit = min(max(tile_bytes + temp_bytes + 2 * param_bytes + (4 << 20),
                         32 << 20),
                     48 << 20)                            # v7x-safe (64 MiB/TC physical)

    out = pl.pallas_call(
        simplenet_kernel,
        out_shape=jax.ShapeDtypeStruct((B, IN_DIM), compute_dtype),
        grid_spec=pltpu.PrefetchScalarGridSpec(
            num_scalar_prefetch=0,
            grid=grid,
            in_specs=[
                pl.BlockSpec((tb, IN_DIM), lambda i: (i, 0)),         # x tile
                rep(w1_c.shape), rep(b1_f.shape),
                rep(w23_c.shape), rep(b23_f.shape),
                rep(w4_c.shape), rep(b4_f.shape),
            ],
            out_specs=pl.BlockSpec((tb, IN_DIM), lambda i: (i, 0)),
        ),
        compiler_params=pltpu.CompilerParams(
            dimension_semantics=("parallel",),
            vmem_limit_bytes=vmem_limit,
        ),
        cost_estimate=cost,
    )(x_c, w1_c, b1_f, w23_c, b23_f, w4_c, b4_f)

    return out


def init_params(key):
    """Deterministic init matching PyTorch nn.Linear's U(-1/sqrt(fan_in), ...)."""
    def linear(key, fan_in, fan_out):
        kw, kb = jax.random.split(key)
        bound = 1.0 / jnp.sqrt(jnp.float32(fan_in))
        # stored as (in, out) so the kernel computes x @ W + b
        w = jax.random.uniform(kw, (fan_in, fan_out), jnp.float32, -bound, bound)
        b = jax.random.uniform(kb, (1, fan_out), jnp.float32, -bound, bound)
        return w, b

    k1, k2, k3, k4 = jax.random.split(key, 4)
    w1, b1 = linear(k1, IN_DIM, HID)     # encoder Linear(784, 64)
    w2, b2 = linear(k2, HID, LATENT)     # encoder Linear(64, 3)
    w3, b3 = linear(k3, LATENT, HID)     # decoder Linear(3, 64)
    w4, b4 = linear(k4, HID, IN_DIM)     # decoder Linear(64, 784)
    return (w1, b1, w2, b2, w3, b3, w4, b4)


def reference_forward(x, params):
    """Unfused pure-JAX f32 reference matching the PyTorch module."""
    w1, b1, w2, b2, w3, b3, w4, b4 = params
    h1 = jnp.maximum(x @ w1 + b1, 0.0)
    z = h1 @ w2 + b2
    h2 = jnp.maximum(z @ w3 + b3, 0.0)
    return h2 @ w4 + b4


if __name__ == "__main__":
    key = jax.random.PRNGKey(0)
    k_params, k_x1, k_x2 = jax.random.split(key, 3)

    params = init_params(k_params)

    # Small example batch — default bf16-streaming path (loose tolerance vs f32 ref).
    B = 16
    x = jax.random.normal(k_x1, (B, IN_DIM), jnp.float32)
    out_bf16 = jax.block_until_ready(simplenet_forward(x, params))
    ref = reference_forward(x, params)
    assert out_bf16.shape == (B, IN_DIM)
    assert jnp.allclose(out_bf16.astype(jnp.float32), ref, atol=5e-2, rtol=5e-2), \
        "bf16 path mismatch vs f32 JAX reference"

    # Exact-semantics f32 path (tight tolerance).
    out_f32 = jax.block_until_ready(
        simplenet_forward(x, params, compute_dtype=jnp.float32))
    assert jnp.allclose(out_f32, ref, atol=1e-4, rtol=1e-4), \
        "f32 path mismatch vs JAX reference"

    # Partial-last-block path (B not a multiple of the tile rows; no jnp.pad).
    B2 = 13
    x2 = jax.random.normal(k_x2, (B2, IN_DIM), jnp.float32)
    out2 = jax.block_until_ready(
        simplenet_forward(x2, params, compute_dtype=jnp.float32))
    ref2 = reference_forward(x2, params)
    assert out2.shape == (B2, IN_DIM)
    assert jnp.allclose(out2, ref2, atol=1e-4, rtol=1e-4), \
        "mismatch on partial last block"

    print("KERNEL_OK")
</pallas_src>

<mosaic_0001>
module attributes {stable_mosaic.version = 11 : i64} {
  func.func @simplenet_kernel(%arg0: i32, %arg1: memref<16x784xbf16, #tpu.memory_space<vmem>>, %arg2: memref<784x64xbf16, #tpu.memory_space<vmem>>, %arg3: memref<1x64xf32, #tpu.memory_space<vmem>>, %arg4: memref<64x64xbf16, #tpu.memory_space<vmem>>, %arg5: memref<1x64xf32, #tpu.memory_space<vmem>>, %arg6: memref<64x784xbf16, #tpu.memory_space<vmem>>, %arg7: memref<1x784xf32, #tpu.memory_space<vmem>>, %arg8: memref<16x784xbf16, #tpu.memory_space<vmem>>) attributes {dimension_semantics = [#tpu.dimension_semantics<parallel>], iteration_bounds = array<i64: 1>, scalar_prefetch = 0 : i64, scratch_operands = 0 : i64, tpu.core_type = #tpu.core_type<tc>, window_params = [{transform_indices = @transform_0, window_bounds = array<i64: 16, 784>}, {pipeline_mode = #tpu.pipeline_mode<synchronous>, transform_indices = @transform_1, window_bounds = array<i64: 784, 64>}, {pipeline_mode = #tpu.pipeline_mode<synchronous>, transform_indices = @transform_2, window_bounds = array<i64: 1, 64>}, {pipeline_mode = #tpu.pipeline_mode<synchronous>, transform_indices = @transform_3, window_bounds = array<i64: 64, 64>}, {pipeline_mode = #tpu.pipeline_mode<synchronous>, transform_indices = @transform_4, window_bounds = array<i64: 1, 64>}, {pipeline_mode = #tpu.pipeline_mode<synchronous>, transform_indices = @transform_5, window_bounds = array<i64: 64, 784>}, {pipeline_mode = #tpu.pipeline_mode<synchronous>, transform_indices = @transform_6, window_bounds = array<i64: 1, 784>}, {transform_indices = @transform_7, window_bounds = array<i64: 16, 784>}]} {
    %c0 = arith.constant 0 : index
    %c0_0 = arith.constant 0 : index
    %0 = vector.load %arg1[%c0, %c0_0] : memref<16x784xbf16, #tpu.memory_space<vmem>>, vector<16x784xbf16>
    %c0_1 = arith.constant 0 : index
    %c0_2 = arith.constant 0 : index
    %1 = vector.load %arg2[%c0_1, %c0_2] : memref<784x64xbf16, #tpu.memory_space<vmem>>, vector<784x64xbf16>
    %cst = arith.constant dense<0.000000e+00> : vector<16x64xf32>
    %2 = tpu.matmul %0, %1, %cst {dimension_numbers = #tpu.dot_dimension_numbers<[1], [0], [0], [1], [0, 0, 1, 1], [], []>} : vector<16x784xbf16>, vector<784x64xbf16>, vector<16x64xf32> -> vector<16x64xf32>
    %c0_3 = arith.constant 0 : index
    %c0_4 = arith.constant 0 : index
    %3 = vector.load %arg3[%c0_3, %c0_4] : memref<1x64xf32, #tpu.memory_space<vmem>>, vector<1x64xf32>
    %4 = vector.broadcast %3 : vector<1x64xf32> to vector<16x64xf32>
    %5 = arith.addf %2, %4 : vector<16x64xf32>
    %cst_5 = arith.constant 0.000000e+00 : f32
    %6 = vector.broadcast %cst_5 : f32 to vector<16x64xf32>
    %7 = arith.maximumf %5, %6 : vector<16x64xf32>
    %8 = arith.truncf %7 : vector<16x64xf32> to vector<16x64xbf16>
    %c0_6 = arith.constant 0 : index
    %c0_7 = arith.constant 0 : index
    %9 = vector.load %arg4[%c0_6, %c0_7] : memref<64x64xbf16, #tpu.memory_space<vmem>>, vector<64x64xbf16>
    %cst_8 = arith.constant dense<0.000000e+00> : vector<16x64xf32>
    %10 = tpu.matmul %8, %9, %cst_8 {dimension_numbers = #tpu.dot_dimension_numbers<[1], [0], [0], [1], [0, 0, 1, 1], [], []>} : vector<16x64xbf16>, vector<64x64xbf16>, vector<16x64xf32> -> vector<16x64xf32>
    %c0_9 = arith.constant 0 : index
    %c0_10 = arith.constant 0 : index
    %11 = vector.load %arg5[%c0_9, %c0_10] : memref<1x64xf32, #tpu.memory_space<vmem>>, vector<1x64xf32>
    %12 = vector.broadcast %11 : vector<1x64xf32> to vector<16x64xf32>
    %13 = arith.addf %10, %12 : vector<16x64xf32>
    %cst_11 = arith.constant 0.000000e+00 : f32
    %14 = vector.broadcast %cst_11 : f32 to vector<16x64xf32>
    %15 = arith.maximumf %13, %14 : vector<16x64xf32>
    %16 = arith.truncf %15 : vector<16x64xf32> to vector<16x64xbf16>
    %c0_12 = arith.constant 0 : index
    %c0_13 = arith.constant 0 : index
    %17 = vector.load %arg6[%c0_12, %c0_13] : memref<64x784xbf16, #tpu.memory_space<vmem>>, vector<64x784xbf16>
    %cst_14 = arith.constant dense<0.000000e+00> : vector<16x784xf32>
    %18 = tpu.matmul %16, %17, %cst_14 {dimension_numbers = #tpu.dot_dimension_numbers<[1], [0], [0], [1], [0, 0, 1, 1], [], []>} : vector<16x64xbf16>, vector<64x784xbf16>, vector<16x784xf32> -> vector<16x784xf32>
    %c0_15 = arith.constant 0 : index
    %c0_16 = arith.constant 0 : index
    %19 = vector.load %arg7[%c0_15, %c0_16] : memref<1x784xf32, #tpu.memory_space<vmem>>, vector<1x784xf32>
    %20 = vector.broadcast %19 : vector<1x784xf32> to vector<16x784xf32>
    %21 = arith.addf %18, %20 : vector<16x784xf32>
    %22 = arith.truncf %21 : vector<16x784xf32> to vector<16x784xbf16>
    %c0_17 = arith.constant 0 : index
    %c0_18 = arith.constant 0 : index
    %23 = vector.load %arg8[%c0_17, %c0_18] : memref<16x784xbf16, #tpu.memory_space<vmem>>, vector<16x784xbf16>
    tpu.vector_store %arg8[%c0_17, %c0_18], %22 {strides = array<i32>} : memref<16x784xbf16, #tpu.memory_space<vmem>>, vector<16x784xbf16>,
    return
  }
  func.func @transform_0(%arg0: i32) -> (i32, i32) {
    %c0_i32 = arith.constant 0 : i32
    %c0_i32_0 = arith.constant 0 : i32
    return %arg0, %c0_i32 : i32, i32
  }
  func.func @transform_1(%arg0: i32) -> (i32, i32) {
    %c0_i32 = arith.constant 0 : i32
    %c0_i32_0 = arith.constant 0 : i32
    %c0_i32_1 = arith.constant 0 : i32
    return %c0_i32, %c0_i32_0 : i32, i32
  }
  func.func @transform_2(%arg0: i32) -> (i32, i32) {
    %c0_i32 = arith.constant 0 : i32
    %c0_i32_0 = arith.constant 0 : i32
    %c0_i32_1 = arith.constant 0 : i32
    return %c0_i32, %c0_i32_0 : i32, i32
  }
  func.func @transform_3(%arg0: i32) -> (i32, i32) {
    %c0_i32 = arith.constant 0 : i32
    %c0_i32_0 = arith.constant 0 : i32
    %c0_i32_1 = arith.constant 0 : i32
    return %c0_i32, %c0_i32_0 : i32, i32
  }
  func.func @transform_4(%arg0: i32) -> (i32, i32) {
    %c0_i32 = arith.constant 0 : i32
    %c0_i32_0 = arith.constant 0 : i32
    %c0_i32_1 = arith.constant 0 : i32
    return %c0_i32, %c0_i32_0 : i32, i32
  }
  func.func @transform_5(%arg0: i32) -> (i32, i32) {
    %c0_i32 = arith.constant 0 : i32
    %c0_i32_0 = arith.constant 0 : i32
    %c0_i32_1 = arith.constant 0 : i32
    return %c0_i32, %c0_i32_0 : i32, i32
  }
  func.func @transform_6(%arg0: i32) -> (i32, i32) {
    %c0_i32 = arith.constant 0 : i32
    %c0_i32_0 = arith.constant 0 : i32
    %c0_i32_1 = arith.constant 0 : i32
    return %c0_i32, %c0_i32_0 : i32, i32
  }
  func.func @transform_7(%arg0: i32) -> (i32, i32) {
    %c0_i32 = arith.constant 0 : i32
    %c0_i32_0 = arith.constant 0 : i32
    return %arg0, %c0_i32 : i32, i32
  }
}

</mosaic_0001>

<llo_original>
// kernel: simplenet_forward.1
$region0: #{simplenet_forward.1}
  #allocation0 [shape = 'u32[]', space=smem, size = 0x4, offset = 0x4, fixed_abs, tag = 'smem constant byte address 0x4 - core index']
  #allocation1 [shape = 'u32[144,128]{1,0:T(1,128)}', space=vmem, size = 0x12000, scoped, tag = 'internal scratch']
  %s0 = inlined_call_operand.vmem [shape: bf16[16,784], index: 0, kind: input, shape index: {}]
  %s1 = inlined_call_operand.vmem [shape: bf16[784,64], index: 1, kind: input, shape index: {}]
  %s2 = inlined_call_operand.vmem [shape: f32[1,64], index: 2, kind: input, shape index: {}]
  %s3 = inlined_call_operand.vmem [shape: bf16[64,64], index: 3, kind: input, shape index: {}]
  %s4 = inlined_call_operand.vmem [shape: f32[1,64], index: 4, kind: input, shape index: {}]
  %s5 = inlined_call_operand.vmem [shape: bf16[64,784], index: 5, kind: input, shape index: {}]
  %s6 = inlined_call_operand.vmem [shape: f32[1,784], index: 6, kind: input, shape index: {}]
  %s7 = inlined_call_operand.hbm [shape: bf16[16,784], index: 7, kind: output, shape index: {}]
  %s8 = sld [smem:[#allocation0]]
  $region38: #{simplenet_forward.1} parent=0
    _
  %s10 = ssub.s32 1, %s8
  %s11 = scalar_select 0, %s10, %s8
  $region1: #{simplenet_forward.1} parent=0
    #allocation2 [shape = 'u8[28672]{0}', space=vmem, size = 0x7000, scoped, tag = 'output window, operand 0, single buffered']
    #allocation3 [shape = 's32[1]{0}', space=sflag, size = 0x4, scoped, tag = 'scoped memory for simplenet_forward.1']
    %12 = vsyncpa [#allocation3], 0
    // Predicated region
    $region2: #{simplenet_forward.1} parent=1 // pred_check
      _
    $region3: #{simplenet_forward.1} parent=1 // pred_check_branch
      %14 = sbr.rel (0) target = $region5
    $region4: #{simplenet_forward.1} parent=1 // pred_region
      _
    $region5: #{simplenet_forward.1} parent=1 // pred_fallthru
      _
    // Predicated region
    $region6: #{simplenet_forward.1} parent=1 // pred_check
      _
    $region7: #{simplenet_forward.1} parent=1 // pred_check_branch
      %16 = sbr.rel (0) target = $region9
    $region8: #{simplenet_forward.1} parent=1 // pred_region
      _
    $region9: #{simplenet_forward.1} parent=1 // pred_fallthru
      _
    // Predicated region
    $region10: #{simplenet_forward.1} parent=1 // pred_check
      _
    $region11: #{simplenet_forward.1} parent=1 // pred_check_branch
      %18 = sbr.rel (0) target = $region13
    $region12: #{simplenet_forward.1} parent=1 // pred_region
      _
    $region13: #{simplenet_forward.1} parent=1 // pred_fallthru
      _
    // Predicated region
    $region14: #{simplenet_forward.1} parent=1 // pred_check
      _
    $region15: #{simplenet_forward.1} parent=1 // pred_check_branch
      %20 = sbr.rel (0) target = $region17
    $region16: #{simplenet_forward.1} parent=1 // pred_region
      _
    $region17: #{simplenet_forward.1} parent=1 // pred_fallthru
      _
    // Predicated region
    $region18: #{simplenet_forward.1} parent=1 // pred_check
      _
    $region19: #{simplenet_forward.1} parent=1 // pred_check_branch
      %22 = sbr.rel (0) target = $region21
    $region20: #{simplenet_forward.1} parent=1 // pred_region
      _
    $region21: #{simplenet_forward.1} parent=1 // pred_fallthru
      _
    // Predicated region
    $region22: #{simplenet_forward.1} parent=1 // pred_check
      _
    $region23: #{simplenet_forward.1} parent=1 // pred_check_branch
      %24 = sbr.rel (0) target = $region25
    $region24: #{simplenet_forward.1} parent=1 // pred_region
      _
    $region25: #{simplenet_forward.1} parent=1 // pred_fallthru
      _
    // Predicated region
    $region26: #{simplenet_forward.1} parent=1 // pred_check
      _
    $region27: #{simplenet_forward.1} parent=1 // pred_check_branch
      %26 = sbr.rel (0) target = $region29
    $region28: #{simplenet_forward.1} parent=1 // pred_region
      _
    $region29: #{simplenet_forward.1} parent=1 // pred_fallthru
      _
    %v28 = vld [vmem:[%s0] sm:$0xff]
    %v29 = vld [vmem:[%s0 + $0x8] sm:$0xff]
    %v30 = vld [vmem:[%s0 + $0x10] sm:$0xff]
    %v31 = vld [vmem:[%s0 + $0x18] sm:$0xf]
    %v32 = vld [vmem:[%s0 + $0x1c] sm:$0xff]
    %v33 = vld [vmem:[%s0 + $0x24] sm:$0xff]
    %v34 = vld [vmem:[%s0 + $0x2c] sm:$0xff]
    %v35 = vld [vmem:[%s0 + $0x34] sm:$0xf]
    %v36 = vld [vmem:[%s1] sm:$0xf]
    %v37 = vld [vmem:[%s1 + $0x4] sm:$0xf]
    %v38 = vld [vmem:[%s1 + $0x8] sm:$0xf]
    %v39 = vld [vmem:[%s1 + $0xc] sm:$0xf]
    %v40 = vld [vmem:[%s1 + $0x10] sm:$0xf]
    %v41 = vld [vmem:[%s1 + $0x14] sm:$0xf]
    %v42 = vld [vmem:[%s1 + $0x18] sm:$0xf]
    %v43 = vld [vmem:[%s1 + $0x1c] sm:$0xf]
    %v44 = vld [vmem:[%s1 + $0x20] sm:$0xf]
    %v45 = vld [vmem:[%s1 + $0x24] sm:$0xf]
    %v46 = vld [vmem:[%s1 + $0x28] sm:$0xf]
    %v47 = vld [vmem:[%s1 + $0x2c] sm:$0xf]
    %v48 = vld [vmem:[%s1 + $0x30] sm:$0xf]
    %v49 = vld [vmem:[%s1 + $0x34] sm:$0xf]
    %v50 = vld [vmem:[%s1 + $0x38] sm:$0xf]
    %v51 = vld [vmem:[%s1 + $0x3c] sm:$0xf]
    %v52 = vld [vmem:[%s1 + $0x40] sm:$0xf]
    %v53 = vld [vmem:[%s1 + $0x44] sm:$0xf]
    %v54 = vld [vmem:[%s1 + $0x48] sm:$0xf]
    %v55 = vld [vmem:[%s1 + $0x4c] sm:$0xf]
    %v56 = vld [vmem:[%s1 + $0x50] sm:$0xf]
    %v57 = vld [vmem:[%s1 + $0x54] sm:$0xf]
    %v58 = vld [vmem:[%s1 + $0x58] sm:$0xf]
    %v59 = vld [vmem:[%s1 + $0x5c] sm:$0xf]
    %v60 = vld [vmem:[%s1 + $0x60] sm:$0xf]
    %v61 = vld [vmem:[%s1 + $0x64] sm:$0xf]
    %v62 = vld [vmem:[%s1 + $0x68] sm:$0xf]
    %v63 = vld [vmem:[%s1 + $0x6c] sm:$0xf]
    %v64 = vld [vmem:[%s1 + $0x70] sm:$0xf]
    %v65 = vld [vmem:[%s1 + $0x74] sm:$0xf]
    %v66 = vld [vmem:[%s1 + $0x78] sm:$0xf]
    %v67 = vld [vmem:[%s1 + $0x7c] sm:$0xf]
    %v68 = vld [vmem:[%s1 + $0x80] sm:$0xf]
    %v69 = vld [vmem:[%s1 + $0x84] sm:$0xf]
    %v70 = vld [vmem:[%s1 + $0x88] sm:$0xf]
    %v71 = vld [vmem:[%s1 + $0x8c] sm:$0xf]
    %v72 = vld [vmem:[%s1 + $0x90] sm:$0xf]
    %v73 = vld [vmem:[%s1 + $0x94] sm:$0xf]
    %v74 = vld [vmem:[%s1 + $0x98] sm:$0xf]
    %v75 = vld [vmem:[%s1 + $0x9c] sm:$0xf]
    %v76 = vld [vmem:[%s1 + $0xa0] sm:$0xf]
    %v77 = vld [vmem:[%s1 + $0xa4] sm:$0xf]
    %v78 = vld [vmem:[%s1 + $0xa8] sm:$0xf]
    %v79 = vld [vmem:[%s1 + $0xac] sm:$0xf]
    %v80 = vld [vmem:[%s1 + $0xb0] sm:$0xf]
    %v81 = vld [vmem:[%s1 + $0xb4] sm:$0xf]
    %v82 = vld [vmem:[%s1 + $0xb8] sm:$0xf]
    %v83 = vld [vmem:[%s1 + $0xbc] sm:$0xf]
    %v84 = vld [vmem:[%s1 + $0xc0] sm:$0xf]
    %v85 = vld [vmem:[%s1 + $0xc4] sm:$0xf]
    %v86 = vld [vmem:[%s1 + $0xc8] sm:$0xf]
    %v87 = vld [vmem:[%s1 + $0xcc] sm:$0xf]
    %v88 = vld [vmem:[%s1 + $0xd0] sm:$0xf]
    %v89 = vld [vmem:[%s1 + $0xd4] sm:$0xf]
    %v90 = vld [vmem:[%s1 + $0xd8] sm:$0xf]
    %v91 = vld [vmem:[%s1 + $0xdc] sm:$0xf]
    %v92 = vld [vmem:[%s1 + $0xe0] sm:$0xf]
    %v93 = vld [vmem:[%s1 + $0xe4] sm:$0xf]
    %v94 = vld [vmem:[%s1 + $0xe8] sm:$0xf]
    %v95 = vld [vmem:[%s1 + $0xec] sm:$0xf]
    %v96 = vld [vmem:[%s1 + $0xf0] sm:$0xf]
    %v97 = vld [vmem:[%s1 + $0xf4] sm:$0xf]
    %v98 = vld [vmem:[%s1 + $0xf8] sm:$0xf]
    %v99 = vld [vmem:[%s1 + $0xfc] sm:$0xf]
    %v100 = vld [vmem:[%s1 + $0x100] sm:$0xf]
    %v101 = vld [vmem:[%s1 + $0x104] sm:$0xf]
    %v102 = vld [vmem:[%s1 + $0x108] sm:$0xf]
    %v103 = vld [vmem:[%s1 + $0x10c] sm:$0xf]
    %v104 = vld [vmem:[%s1 + $0x110] sm:$0xf]
    %v105 = vld [vmem:[%s1 + $0x114] sm:$0xf]
    %v106 = vld [vmem:[%s1 + $0x118] sm:$0xf]
    %v107 = vld [vmem:[%s1 + $0x11c] sm:$0xf]
    %v108 = vld [vmem:[%s1 + $0x120] sm:$0xf]
    %v109 = vld [vmem:[%s1 + $0x124] sm:$0xf]
    %v110 = vld [vmem:[%s1 + $0x128] sm:$0xf]
    %v111 = vld [vmem:[%s1 + $0x12c] sm:$0xf]
    %v112 = vld [vmem:[%s1 + $0x130] sm:$0xf]
    %v113 = vld [vmem:[%s1 + $0x134] sm:$0xf]
    %v114 = vld [vmem:[%s1 + $0x138] sm:$0xf]
    %v115 = vld [vmem:[%s1 + $0x13c] sm:$0xf]
    %v116 = vld [vmem:[%s1 + $0x140] sm:$0xf]
    %v117 = vld [vmem:[%s1 + $0x144] sm:$0xf]
    %v118 = vld [vmem:[%s1 + $0x148] sm:$0xf]
    %v119 = vld [vmem:[%s1 + $0x14c] sm:$0xf]
    %v120 = vld [vmem:[%s1 + $0x150] sm:$0xf]
    %v121 = vld [vmem:[%s1 + $0x154] sm:$0xf]
    %v122 = vld [vmem:[%s1 + $0x158] sm:$0xf]
    %v123 = vld [vmem:[%s1 + $0x15c] sm:$0xf]
    %v124 = vld [vmem:[%s1 + $0x160] sm:$0xf]
    %v125 = vld [vmem:[%s1 + $0x164] sm:$0xf]
    %v126 = vld [vmem:[%s1 + $0x168] sm:$0xf]
    %v127 = vld [vmem:[%s1 + $0x16c] sm:$0xf]
    %v128 = vld [vmem:[%s1 + $0x170] sm:$0xf]
    %v129 = vld [vmem:[%s1 + $0x174] sm:$0xf]
    %v130 = vld [vmem:[%s1 + $0x178] sm:$0xf]
    %v131 = vld [vmem:[%s1 + $0x17c] sm:$0xf]
    %v132 = vld [vmem:[%s1 + $0x180] sm:$0xf]
    %v133 = vld [vmem:[%s1 + $0x184] sm:$0xf]
    %v134 = vld [vmem:[%s2] sm:$0x1]
    %v136 = vlaneseq
    %v137 = vshrl.u32 %v136, 7
    %v138 = vsub.s32 0, %v137
    %v139 = vrot.slane %v134, %v138
    %v149 = vunpack.c.l.b16 %v28
    %v150 = vunpack.c.h.b16 %v28
    %v151 = vunpack.c.l.b16 %v29
    %v152 = vunpack.c.h.b16 %v29
    %v153 = vunpack.c.l.b16 %v30
    %v154 = vunpack.c.h.b16 %v30
    %v155 = vunpack.c.l.b16 %v31
    %v156 = vunpack.c.l.b16 %v32
    %v157 = vunpack.c.h.b16 %v32
    %v158 = vunpack.c.l.b16 %v33
    %v159 = vunpack.c.h.b16 %v33
    %v160 = vunpack.c.l.b16 %v34
    %v161 = vunpack.c.h.b16 %v34
    %v162 = vunpack.c.l.b16 %v35
    %v163 = vpack.c.b16 %v156, %v149
    %v164 = vpack.c.b16 %v157, %v150
    %v165 = vpack.c.b16 %v158, %v151
    %v166 = vpack.c.b16 %v159, %v152
    %v167 = vpack.c.b16 %v160, %v153
    %v168 = vpack.c.b16 %v161, %v154
    %v169 = vpack.c.b16 %v162, %v155
    %v274 = vunpack.c.l.b16 %v36
    %v275 = vunpack.c.l.b16 %v37
    %v276 = vunpack.c.l.b16 %v38
    %v277 = vunpack.c.l.b16 %v39
    %v278 = vunpack.c.l.b16 %v40
    %v279 = vunpack.c.l.b16 %v41
    %v280 = vunpack.c.l.b16 %v42
    %v281 = vunpack.c.l.b16 %v43
    %v282 = vunpack.c.l.b16 %v44
    %v283 = vunpack.c.l.b16 %v45
    %v284 = vunpack.c.l.b16 %v46
    %v285 = vunpack.c.l.b16 %v47
    %v286 = vunpack.c.l.b16 %v48
    %v287 = vunpack.c.l.b16 %v49
    %v288 = vunpack.c.l.b16 %v50
    %v289 = vunpack.c.l.b16 %v51
    %v290 = vunpack.c.l.b16 %v52
    %v291 = vunpack.c.l.b16 %v53
    %v292 = vunpack.c.l.b16 %v54
    %v293 = vunpack.c.l.b16 %v55
    %v294 = vunpack.c.l.b16 %v56
    %v295 = vunpack.c.l.b16 %v57
    %v296 = vunpack.c.l.b16 %v58
    %v297 = vunpack.c.l.b16 %v59
    %v298 = vunpack.c.l.b16 %v60
    %v299 = vunpack.c.l.b16 %v61
    %v300 = vunpack.c.l.b16 %v62
    %v301 = vunpack.c.l.b16 %v63
    %v302 = vunpack.c.l.b16 %v64
    %v303 = vunpack.c.l.b16 %v65
    %v304 = vunpack.c.l.b16 %v66
    %v305 = vunpack.c.l.b16 %v67
    %v306 = vunpack.c.l.b16 %v68
    %v307 = vunpack.c.l.b16 %v69
    %v308 = vunpack.c.l.b16 %v70
    %v309 = vunpack.c.l.b16 %v71
    %v310 = vunpack.c.l.b16 %v72
    %v311 = vunpack.c.l.b16 %v73
    %v312 = vunpack.c.l.b16 %v74
    %v313 = vunpack.c.l.b16 %v75
    %v314 = vunpack.c.l.b16 %v76
    %v315 = vunpack.c.l.b16 %v77
    %v316 = vunpack.c.l.b16 %v78
    %v317 = vunpack.c.l.b16 %v79
    %v318 = vunpack.c.l.b16 %v80
    %v319 = vunpack.c.l.b16 %v81
    %v320 = vunpack.c.l.b16 %v82
    %v321 = vunpack.c.l.b16 %v83
    %v322 = vunpack.c.l.b16 %v84
    %v323 = vunpack.c.l.b16 %v85
    %v324 = vunpack.c.l.b16 %v86
    %v325 = vunpack.c.l.b16 %v87
    %v326 = vunpack.c.l.b16 %v88
    %v327 = vunpack.c.l.b16 %v89
    %v328 = vunpack.c.l.b16 %v90
    %v329 = vunpack.c.l.b16 %v91
    %v330 = vunpack.c.l.b16 %v92
    %v331 = vunpack.c.l.b16 %v93
    %v332 = vunpack.c.l.b16 %v94
    %v333 = vunpack.c.l.b16 %v95
    %v334 = vunpack.c.l.b16 %v96
    %v335 = vunpack.c.l.b16 %v97
    %v336 = vunpack.c.l.b16 %v98
    %v337 = vunpack.c.l.b16 %v99
    %v338 = vunpack.c.l.b16 %v100
    %v339 = vunpack.c.l.b16 %v101
    %v340 = vunpack.c.l.b16 %v102
    %v341 = vunpack.c.l.b16 %v103
    %v342 = vunpack.c.l.b16 %v104
    %v343 = vunpack.c.l.b16 %v105
    %v344 = vunpack.c.l.b16 %v106
    %v345 = vunpack.c.l.b16 %v107
    %v346 = vunpack.c.l.b16 %v108
    %v347 = vunpack.c.l.b16 %v109
    %v348 = vunpack.c.l.b16 %v110
    %v349 = vunpack.c.l.b16 %v111
    %v350 = vunpack.c.l.b16 %v112
    %v351 = vunpack.c.l.b16 %v113
    %v352 = vunpack.c.l.b16 %v114
    %v353 = vunpack.c.l.b16 %v115
    %v354 = vunpack.c.l.b16 %v116
    %v355 = vunpack.c.l.b16 %v117
    %v356 = vunpack.c.l.b16 %v118
    %v357 = vunpack.c.l.b16 %v119
    %v358 = vunpack.c.l.b16 %v120
    %v359 = vunpack.c.l.b16 %v121
    %v360 = vunpack.c.l.b16 %v122
    %v361 = vunpack.c.l.b16 %v123
    %v362 = vunpack.c.l.b16 %v124
    %v363 = vunpack.c.l.b16 %v125
    %v364 = vunpack.c.l.b16 %v126
    %v365 = vunpack.c.l.b16 %v127
    %v366 = vunpack.c.l.b16 %v128
    %v367 = vunpack.c.l.b16 %v129
    %v368 = vunpack.c.l.b16 %v130
    %v369 = vunpack.c.l.b16 %v131
    %v370 = vunpack.c.l.b16 %v132
    %v371 = vunpack.c.l.b16 %v133
    %v372 = vpack.c.b16 %v275, %v274
    %v373 = vpack.c.b16 %v277, %v276
    %v374 = vpack.c.b16 %v279, %v278
    %v375 = vpack.c.b16 %v281, %v280
    %v376 = vpack.c.b16 %v283, %v282
    %v377 = vpack.c.b16 %v285, %v284
    %v378 = vpack.c.b16 %v287, %v286
    %v379 = vpack.c.b16 %v289, %v288
    %v380 = vpack.c.b16 %v291, %v290
    %v381 = vpack.c.b16 %v293, %v292
    %v382 = vpack.c.b16 %v295, %v294
    %v383 = vpack.c.b16 %v297, %v296
    %v384 = vpack.c.b16 %v299, %v298
    %v385 = vpack.c.b16 %v301, %v300
    %v386 = vpack.c.b16 %v303, %v302
    %v387 = vpack.c.b16 %v305, %v304
    %v388 = vpack.c.b16 %v307, %v306
    %v389 = vpack.c.b16 %v309, %v308
    %v390 = vpack.c.b16 %v311, %v310
    %v391 = vpack.c.b16 %v313, %v312
    %v392 = vpack.c.b16 %v315, %v314
    %v393 = vpack.c.b16 %v317, %v316
    %v394 = vpack.c.b16 %v319, %v318
    %v395 = vpack.c.b16 %v321, %v320
    %v396 = vpack.c.b16 %v323, %v322
    %v397 = vpack.c.b16 %v325, %v324
    %v398 = vpack.c.b16 %v327, %v326
    %v399 = vpack.c.b16 %v329, %v328
    %v400 = vpack.c.b16 %v331, %v330
    %v401 = vpack.c.b16 %v333, %v332
    %v402 = vpack.c.b16 %v335, %v334
    %v403 = vpack.c.b16 %v337, %v336
    %v404 = vpack.c.b16 %v339, %v338
    %v405 = vpack.c.b16 %v341, %v340
    %v406 = vpack.c.b16 %v343, %v342
    %v407 = vpack.c.b16 %v345, %v344
    %v408 = vpack.c.b16 %v347, %v346
    %v409 = vpack.c.b16 %v349, %v348
    %v410 = vpack.c.b16 %v351, %v350
    %v411 = vpack.c.b16 %v353, %v352
    %v412 = vpack.c.b16 %v355, %v354
    %v413 = vpack.c.b16 %v357, %v356
    %v414 = vpack.c.b16 %v359, %v358
    %v415 = vpack.c.b16 %v361, %v360
    %v416 = vpack.c.b16 %v363, %v362
    %v417 = vpack.c.b16 %v365, %v364
    %v418 = vpack.c.b16 %v367, %v366
    %v419 = vpack.c.b16 %v369, %v368
    %v420 = vpack.c.b16 %v371, %v370
    %vm470 = vcmask 130048
    %v472 = vsel %vm470, %v169, 0
    %474 = vmatprep.subr.bf16.mxu0 0
    %475 = vmatpush1.bf16.msra.mxu0 %v372
    %476 = vmatprep.subr.bf16.mxu0 0
    %477 = vmatpush1.bf16.msra.mxu0 %v373
    %478 = vmatprep.subr.bf16.mxu0 0
    %479 = vmatpush1.bf16.msra.mxu0 %v374
    %480 = vmatprep.subr.bf16.mxu0 0
    %481 = vmatpush1.bf16.msra.mxu0 %v375
    %482 = vmatprep.subr.bf16.mxu0 0
    %483 = vmatpush1.bf16.msra.mxu0 %v376
    %484 = vmatprep.subr.bf16.mxu0 0
    %485 = vmatpush1.bf16.msra.mxu0 %v377
    %486 = vmatprep.subr.bf16.mxu0 0
    %487 = vmatpush1.bf16.msra.mxu0 %v378
    %488 = vmatprep.subr.bf16.mxu0 0
    %489 = vmatpush1.bf16.msra.mxu0 %v379
    %490 = vmatprep.subr.bf16.mxu0 0
    %491 = vmatpush1.bf16.msra.mxu0 %v380
    %492 = vmatprep.subr.bf16.mxu0 0
    %493 = vmatpush1.bf16.msra.mxu0 %v381
    %494 = vmatprep.subr.bf16.mxu0 0
    %495 = vmatpush1.bf16.msra.mxu0 %v382
    %496 = vmatprep.subr.bf16.mxu0 0
    %497 = vmatpush1.bf16.msra.mxu0 %v383
    %498 = vmatprep.subr.bf16.mxu0 0
    %499 = vmatpush1.bf16.msra.mxu0 %v384
    %500 = vmatprep.subr.bf16.mxu0 0
    %501 = vmatpush1.bf16.msra.mxu0 %v385
    %502 = vmatprep.subr.bf16.mxu0 0
    %503 = vmatpush1.bf16.msra.mxu0 %v386
    %504 = vmatprep.subr.bf16.mxu0 0
    %505 = vmatpush1.bf16.msra.mxu0 %v387
    %506 = vmatprep.mubr.bf16.mxu0 %v164
    %507 = vmatmul.mubr.bf16.gmra.mrb[0].mxu0 %v163
    %v508 = vpop.f32.mrb[0].mxu0
    %v509 = vadd.f32 %v139, %v508
    %v510 = vpop.f32.mrb[0].mxu0
    %v511 = vpop.f32.mrb[0].mxu0
    %v512 = vadd.f32 %v139, %v511
    %v513 = vpop.f32.mrb[0].mxu0
    %514 = vdwg.mxu0
    %515 = vmatprep.subr.bf16.mxu0 0
    %516 = vmatpush1.bf16.msra.mxu0 %v388
    %517 = vmatprep.subr.bf16.mxu0 0
    %518 = vmatpush1.bf16.msra.mxu0 %v389
    %519 = vmatprep.subr.bf16.mxu0 0
    %520 = vmatpush1.bf16.msra.mxu0 %v390
    %521 = vmatprep.subr.bf16.mxu0 0
    %522 = vmatpush1.bf16.msra.mxu0 %v391
    %523 = vmatprep.subr.bf16.mxu0 0
    %524 = vmatpush1.bf16.msra.mxu0 %v392
    %525 = vmatprep.subr.bf16.mxu0 0
    %526 = vmatpush1.bf16.msra.mxu0 %v393
    %527 = vmatprep.subr.bf16.mxu0 0
    %528 = vmatpush1.bf16.msra.mxu0 %v394
    %529 = vmatprep.subr.bf16.mxu0 0
    %530 = vmatpush1.bf16.msra.mxu0 %v395
    %531 = vmatprep.subr.bf16.mxu0 0
    %532 = vmatpush1.bf16.msra.mxu0 %v396
    %533 = vmatprep.subr.bf16.mxu0 0
    %534 = vmatpush1.bf16.msra.mxu0 %v397
    %535 = vmatprep.subr.bf16.mxu0 0
    %536 = vmatpush1.bf16.msra.mxu0 %v398
    %537 = vmatprep.subr.bf16.mxu0 0
    %538 = vmatpush1.bf16.msra.mxu0 %v399
    %539 = vmatprep.subr.bf16.mxu0 0
    %540 = vmatpush1.bf16.msra.mxu0 %v400
    %541 = vmatprep.subr.bf16.mxu0 0
    %542 = vmatpush1.bf16.msra.mxu0 %v401
    %543 = vmatprep.subr.bf16.mxu0 0
    %544 = vmatpush1.bf16.msra.mxu0 %v402
    %545 = vmatprep.subr.bf16.mxu0 0
    %546 = vmatpush1.bf16.msra.mxu0 %v403
    %547 = vmatprep.mubr.bf16.mxu0 %v166
    %548 = vmatmul.mubr.bf16.gmra.mrb[0].mxu0 %v165
    %v549 = vpop.f32.mrb[0].mxu0
    %v550 = vadd.f32 %v509, %v549
    %v551 = vpop.f32.mrb[0].mxu0
    %v552 = vpop.f32.mrb[0].mxu0
    %v553 = vadd.f32 %v512, %v552
    %v554 = vpop.f32.mrb[0].mxu0
    %555 = vdwg.mxu0
    %556 = vmatprep.subr.bf16.mxu0 0
    %557 = vmatpush1.bf16.msra.mxu0 %v404
    %558 = vmatprep.subr.bf16.mxu0 0
    %559 = vmatpush1.bf16.msra.mxu0 %v405
    %560 = vmatprep.subr.bf16.mxu0 0
    %561 = vmatpush1.bf16.msra.mxu0 %v406
    %562 = vmatprep.subr.bf16.mxu0 0
    %563 = vmatpush1.bf16.msra.mxu0 %v407
    %564 = vmatprep.subr.bf16.mxu0 0
    %565 = vmatpush1.bf16.msra.mxu0 %v408
    %566 = vmatprep.subr.bf16.mxu0 0
    %567 = vmatpush1.bf16.msra.mxu0 %v409
    %568 = vmatprep.subr.bf16.mxu0 0
    %569 = vmatpush1.bf16.msra.mxu0 %v410
    %570 = vmatprep.subr.bf16.mxu0 0
    %571 = vmatpush1.bf16.msra.mxu0 %v411
    %572 = vmatprep.subr.bf16.mxu0 0
    %573 = vmatpush1.bf16.msra.mxu0 %v412
    %574 = vmatprep.subr.bf16.mxu0 0
    %575 = vmatpush1.bf16.msra.mxu0 %v413
    %576 = vmatprep.subr.bf16.mxu0 0
    %577 = vmatpush1.bf16.msra.mxu0 %v414
    %578 = vmatprep.subr.bf16.mxu0 0
    %579 = vmatpush1.bf16.msra.mxu0 %v415
    %580 = vmatprep.subr.bf16.mxu0 0
    %581 = vmatpush1.bf16.msra.mxu0 %v416
    %582 = vmatprep.subr.bf16.mxu0 0
    %583 = vmatpush1.bf16.msra.mxu0 %v417
    %584 = vmatprep.subr.bf16.mxu0 0
    %585 = vmatpush1.bf16.msra.mxu0 %v418
    %586 = vmatprep.subr.bf16.mxu0 0
    %587 = vmatpush1.bf16.msra.mxu0 %v419
    %588 = vmatprep.mubr.bf16.mxu0 %v168
    %589 = vmatmul.mubr.bf16.gmra.mrb[0].mxu0 %v167
    %v590 = vpop.f32.mrb[0].mxu0
    %v591 = vadd.f32 %v550, %v590
    %v592 = vpop.f32.mrb[0].mxu0
    %v593 = vpop.f32.mrb[0].mxu0
    %v594 = vadd.f32 %v553, %v593
    %v595 = vpop.f32.mrb[0].mxu0
    %596 = vdwg.mxu0
    %597 = vmatprep.subr.bf16.mxu0 0
    %598 = vmatpush1.bf16.msra.mxu0 %v420
    %599 = vmatprep.subr.bf16.mxu0 0
    %600 = vmatpush1.bf16.msra.mxu0 0
    %601 = vmatprep.subr.bf16.mxu0 0
    %602 = vmatpush1.bf16.msra.mxu0 0
    %603 = vmatprep.subr.bf16.mxu0 0
    %604 = vmatpush1.bf16.msra.mxu0 0
    %605 = vmatprep.subr.bf16.mxu0 0
    %606 = vmatpush1.bf16.msra.mxu0 0
    %607 = vmatprep.subr.bf16.mxu0 0
    %608 = vmatpush1.bf16.msra.mxu0 0
    %609 = vmatprep.subr.bf16.mxu0 0
    %610 = vmatpush1.bf16.msra.mxu0 0
    %611 = vmatprep.subr.bf16.mxu0 0
    %612 = vmatpush1.bf16.msra.mxu0 0
    %613 = vmatprep.subr.bf16.mxu0 0
    %614 = vmatpush1.bf16.msra.mxu0 0
    %615 = vmatprep.subr.bf16.mxu0 0
    %616 = vmatpush1.bf16.msra.mxu0 0
    %617 = vmatprep.subr.bf16.mxu0 0
    %618 = vmatpush1.bf16.msra.mxu0 0
    %619 = vmatprep.subr.bf16.mxu0 0
    %620 = vmatpush1.bf16.msra.mxu0 0
    %621 = vmatprep.subr.bf16.mxu0 0
    %622 = vmatpush1.bf16.msra.mxu0 0
    %623 = vmatprep.subr.bf16.mxu0 0
    %624 = vmatpush1.bf16.msra.mxu0 0
    %625 = vmatprep.subr.bf16.mxu0 0
    %626 = vmatpush1.bf16.msra.mxu0 0
    %627 = vmatprep.subr.bf16.mxu0 0
    %628 = vmatpush1.bf16.msra.mxu0 0
    %629 = vmatprep.mubr.bf16.mxu0 0
    %630 = vmatmul.mubr.bf16.gmra.mrb[0].mxu0 %v472
    %v631 = vpop.f32.mrb[0].mxu0
    %v632 = vadd.f32 %v591, %v631
    %v633 = vpop.f32.mrb[0].mxu0
    %v634 = vpop.f32.mrb[0].mxu0
    %v635 = vadd.f32 %v594, %v634
    %v636 = vpop.f32.mrb[0].mxu0
    %637 = vdwg.mxu0
    %v638 = vmax.f32 %v632, 0.0
    %v639 = vmax.f32 %v635, 0.0
    %v640 = vpack.c.bf16 %v639, %v638
    %v641 = vld [vmem:[%s3] sm:$0xf]
    %v642 = vld [vmem:[%s3 + $0x4] sm:$0xf]
    %v643 = vld [vmem:[%s3 + $0x8] sm:$0xf]
    %v644 = vld [vmem:[%s3 + $0xc] sm:$0xf]
    %v645 = vld [vmem:[%s3 + $0x10] sm:$0xf]
    %v646 = vld [vmem:[%s3 + $0x14] sm:$0xf]
    %v647 = vld [vmem:[%s3 + $0x18] sm:$0xf]
    %v648 = vld [vmem:[%s3 + $0x1c] sm:$0xf]
    %v649 = vld [vmem:[%s4] sm:$0x1]
    %v651 = vlaneseq
    %v652 = vshrl.u32 %v651, 7
    %v653 = vsub.s32 0, %v652
    %v654 = vrot.slane %v649, %v653
    %v664 = vunpack.c.l.b16 %v641
    %v665 = vunpack.c.l.b16 %v642
    %v666 = vunpack.c.l.b16 %v643
    %v667 = vunpack.c.l.b16 %v644
    %v668 = vunpack.c.l.b16 %v645
    %v669 = vunpack.c.l.b16 %v646
    %v670 = vunpack.c.l.b16 %v647
    %v671 = vunpack.c.l.b16 %v648
    %v672 = vpack.c.b16 %v665, %v664
    %v673 = vpack.c.b16 %v667, %v666
    %v674 = vpack.c.b16 %v669, %v668
    %v675 = vpack.c.b16 %v671, %v670
    %vm680 = vcmask 523264
    %v682 = vsel %vm680, %v640, 0
    %684 = vmatprep.subr.bf16.mxu0 0
    %685 = vmatpush1.bf16.msra.mxu0 %v672
    %686 = vmatprep.subr.bf16.mxu0 0
    %687 = vmatpush1.bf16.msra.mxu0 %v673
    %688 = vmatprep.subr.bf16.mxu0 0
    %689 = vmatpush1.bf16.msra.mxu0 %v674
    %690 = vmatprep.subr.bf16.mxu0 0
    %691 = vmatpush1.bf16.msra.mxu0 %v675
    %692 = vmatprep.subr.bf16.mxu0 0
    %693 = vmatpush1.bf16.msra.mxu0 0
    %694 = vmatprep.subr.bf16.mxu0 0
    %695 = vmatpush1.bf16.msra.mxu0 0
    %696 = vmatprep.subr.bf16.mxu0 0
    %697 = vmatpush1.bf16.msra.mxu0 0
    %698 = vmatprep.subr.bf16.mxu0 0
    %699 = vmatpush1.bf16.msra.mxu0 0
    %700 = vmatprep.subr.bf16.mxu0 0
    %701 = vmatpush1.bf16.msra.mxu0 0
    %702 = vmatprep.subr.bf16.mxu0 0
    %703 = vmatpush1.bf16.msra.mxu0 0
    %704 = vmatprep.subr.bf16.mxu0 0
    %705 = vmatpush1.bf16.msra.mxu0 0
    %706 = vmatprep.subr.bf16.mxu0 0
    %707 = vmatpush1.bf16.msra.mxu0 0
    %708 = vmatprep.subr.bf16.mxu0 0
    %709 = vmatpush1.bf16.msra.mxu0 0
    %710 = vmatprep.subr.bf16.mxu0 0
    %711 = vmatpush1.bf16.msra.mxu0 0
    %712 = vmatprep.subr.bf16.mxu0 0
    %713 = vmatpush1.bf16.msra.mxu0 0
    %714 = vmatprep.subr.bf16.mxu0 0
    %715 = vmatpush1.bf16.msra.mxu0 0
    %716 = vmatprep.mubr.bf16.mxu0 0
    %717 = vmatmul.mubr.bf16.gmra.mrb[0].mxu0 %v682
    %v718 = vpop.f32.mrb[0].mxu0
    %v719 = vadd.f32 %v654, %v718
    %v720 = vpop.f32.mrb[0].mxu0
    %v721 = vpop.f32.mrb[0].mxu0
    %v722 = vadd.f32 %v654, %v721
    %v723 = vpop.f32.mrb[0].mxu0
    %724 = vdwg.mxu0
    %v725 = vmax.f32 %v719, 0.0
    %v726 = vmax.f32 %v722, 0.0
    %v727 = vpack.c.bf16 %v726, %v725
    %v728 = vld [vmem:[%s5] sm:$0xff]
    %v729 = vld [vmem:[%s5 + $0x8] sm:$0xff]
    %v730 = vld [vmem:[%s5 + $0x10] sm:$0xff]
    %v731 = vld [vmem:[%s5 + $0x18] sm:$0xf]
    %v732 = vld [vmem:[%s5 + $0x1c] sm:$0xff]
    %v733 = vld [vmem:[%s5 + $0x24] sm:$0xff]
    %v734 = vld [vmem:[%s5 + $0x2c] sm:$0xff]
    %v735 = vld [vmem:[%s5 + $0x34] sm:$0xf]
    %v736 = vld [vmem:[%s5 + $0x38] sm:$0xff]
    %v737 = vld [vmem:[%s5 + $0x40] sm:$0xff]
    %v738 = vld [vmem:[%s5 + $0x48] sm:$0xff]
    %v739 = vld [vmem:[%s5 + $0x50] sm:$0xf]
    %v740 = vld [vmem:[%s5 + $0x54] sm:$0xff]
    %v741 = vld [vmem:[%s5 + $0x5c] sm:$0xff]
    %v742 = vld [vmem:[%s5 + $0x64] sm:$0xff]
    %v743 = vld [vmem:[%s5 + $0x6c] sm:$0xf]
    %v744 = vld [vmem:[%s5 + $0x70] sm:$0xff]
    %v745 = vld [vmem:[%s5 + $0x78] sm:$0xff]
    %v746 = vld [vmem:[%s5 + $0x80] sm:$0xff]
    %v747 = vld [vmem:[%s5 + $0x88] sm:$0xf]
    %v748 = vld [vmem:[%s5 + $0x8c] sm:$0xff]
    %v749 = vld [vmem:[%s5 + $0x94] sm:$0xff]
    %v750 = vld [vmem:[%s5 + $0x9c] sm:$0xff]
    %v751 = vld [vmem:[%s5 + $0xa4] sm:$0xf]
    %v752 = vld [vmem:[%s5 + $0xa8] sm:$0xff]
    %v753 = vld [vmem:[%s5 + $0xb0] sm:$0xff]
    %v754 = vld [vmem:[%s5 + $0xb8] sm:$0xff]
    %v755 = vld [vmem:[%s5 + $0xc0] sm:$0xf]
    %v756 = vld [vmem:[%s5 + $0xc4] sm:$0xff]
    %v757 = vld [vmem:[%s5 + $0xcc] sm:$0xff]
    %v758 = vld [vmem:[%s5 + $0xd4] sm:$0xff]
    %v759 = vld [vmem:[%s5 + $0xdc] sm:$0xf]
    %v760 = vld [vmem:[%s6] sm:$0x7f]
    %v762 = vlaneseq
    %v763 = vshrl.u32 %v762, 7
    %v764 = vsub.s32 0, %v763
    %v765 = vrot.slane %v760, %v764
    %v766 = vlaneseq
    %v767 = vshrl.u32 %v766, 7
    %v768 = vsub.s32 1, %v767
    %v769 = vrot.slane %v760, %v768
    %v770 = vlaneseq
    %v771 = vshrl.u32 %v770, 7
    %v772 = vsub.s32 2, %v771
    %v773 = vrot.slane %v760, %v772
    %v774 = vlaneseq
    %v775 = vshrl.u32 %v774, 7
    %v776 = vsub.s32 3, %v775
    %v777 = vrot.slane %v760, %v776
    %v778 = vlaneseq
    %v779 = vshrl.u32 %v778, 7
    %v780 = vsub.s32 4, %v779
    %v781 = vrot.slane %v760, %v780
    %v782 = vlaneseq
    %v783 = vshrl.u32 %v782, 7
    %v784 = vsub.s32 5, %v783
    %v785 = vrot.slane %v760, %v784
    %v786 = vlaneseq
    %v787 = vshrl.u32 %v786, 7
    %v788 = vsub.s32 6, %v787
    %v789 = vrot.slane %v760, %v788
    %v829 = vunpack.c.l.b16 %v728
    %v830 = vunpack.c.h.b16 %v728
    %v831 = vunpack.c.l.b16 %v729
    %v832 = vunpack.c.h.b16 %v729
    %v833 = vunpack.c.l.b16 %v730
    %v834 = vunpack.c.h.b16 %v730
    %v835 = vunpack.c.l.b16 %v731
    %v836 = vunpack.c.l.b16 %v732
    %v837 = vunpack.c.h.b16 %v732
    %v838 = vunpack.c.l.b16 %v733
    %v839 = vunpack.c.h.b16 %v733
    %v840 = vunpack.c.l.b16 %v734
    %v841 = vunpack.c.h.b16 %v734
    %v842 = vunpack.c.l.b16 %v735
    %v843 = vunpack.c.l.b16 %v736
    %v844 = vunpack.c.h.b16 %v736
    %v845 = vunpack.c.l.b16 %v737
    %v846 = vunpack.c.h.b16 %v737
    %v847 = vunpack.c.l.b16 %v738
    %v848 = vunpack.c.h.b16 %v738
    %v849 = vunpack.c.l.b16 %v739
    %v850 = vunpack.c.l.b16 %v740
    %v851 = vunpack.c.h.b16 %v740
    %v852 = vunpack.c.l.b16 %v741
    %v853 = vunpack.c.h.b16 %v741
    %v854 = vunpack.c.l.b16 %v742
    %v855 = vunpack.c.h.b16 %v742
    %v856 = vunpack.c.l.b16 %v743
    %v857 = vunpack.c.l.b16 %v744
    %v858 = vunpack.c.h.b16 %v744
    %v859 = vunpack.c.l.b16 %v745
    %v860 = vunpack.c.h.b16 %v745
    %v861 = vunpack.c.l.b16 %v746
    %v862 = vunpack.c.h.b16 %v746
    %v863 = vunpack.c.l.b16 %v747
    %v864 = vunpack.c.l.b16 %v748
    %v865 = vunpack.c.h.b16 %v748
    %v866 = vunpack.c.l.b16 %v749
    %v867 = vunpack.c.h.b16 %v749
    %v868 = vunpack.c.l.b16 %v750
    %v869 = vunpack.c.h.b16 %v750
    %v870 = vunpack.c.l.b16 %v751
    %v871 = vunpack.c.l.b16 %v752
    %v872 = vunpack.c.h.b16 %v752
    %v873 = vunpack.c.l.b16 %v753
    %v874 = vunpack.c.h.b16 %v753
    %v875 = vunpack.c.l.b16 %v754
    %v876 = vunpack.c.h.b16 %v754
    %v877 = vunpack.c.l.b16 %v755
    %v878 = vunpack.c.l.b16 %v756
    %v879 = vunpack.c.h.b16 %v756
    %v880 = vunpack.c.l.b16 %v757
    %v881 = vunpack.c.h.b16 %v757
    %v882 = vunpack.c.l.b16 %v758
    %v883 = vunpack.c.h.b16 %v758
    %v884 = vunpack.c.l.b16 %v759
    %v885 = vpack.c.b16 %v836, %v829
    %v886 = vpack.c.b16 %v837, %v830
    %v887 = vpack.c.b16 %v838, %v831
    %v888 = vpack.c.b16 %v839, %v832
    %v889 = vpack.c.b16 %v840, %v833
    %v890 = vpack.c.b16 %v841, %v834
    %v891 = vpack.c.b16 %v842, %v835
    %v892 = vpack.c.b16 %v850, %v843
    %v893 = vpack.c.b16 %v851, %v844
    %v894 = vpack.c.b16 %v852, %v845
    %v895 = vpack.c.b16 %v853, %v846
    %v896 = vpack.c.b16 %v854, %v847
    %v897 = vpack.c.b16 %v855, %v848
    %v898 = vpack.c.b16 %v856, %v849
    %v899 = vpack.c.b16 %v864, %v857
    %v900 = vpack.c.b16 %v865, %v858
    %v901 = vpack.c.b16 %v866, %v859
    %v902 = vpack.c.b16 %v867, %v860
    %v903 = vpack.c.b16 %v868, %v861
    %v904 = vpack.c.b16 %v869, %v862
    %v905 = vpack.c.b16 %v870, %v863
    %v906 = vpack.c.b16 %v878, %v871
    %v907 = vpack.c.b16 %v879, %v872
    %v908 = vpack.c.b16 %v880, %v873
    %v909 = vpack.c.b16 %v881, %v874
    %v910 = vpack.c.b16 %v882, %v875
    %v911 = vpack.c.b16 %v883, %v876
    %v912 = vpack.c.b16 %v884, %v877
    %v942 = vsel %vm680, %v727, 0
    %944 = vmatprep.subr.bf16.mxu0 %v886
    %945 = vmatpush1.bf16.msra.mxu0 %v885
    %946 = vmatprep.subr.bf16.mxu0 %v893
    %947 = vmatpush1.bf16.msra.mxu0 %v892
    %948 = vmatprep.subr.bf16.mxu0 %v900
    %949 = vmatpush1.bf16.msra.mxu0 %v899
    %950 = vmatprep.subr.bf16.mxu0 %v907
    %951 = vmatpush1.bf16.msra.mxu0 %v906
    %952 = vmatprep.subr.bf16.mxu0 0
    %953 = vmatpush1.bf16.msra.mxu0 0
    %954 = vmatprep.subr.bf16.mxu0 0
    %955 = vmatpush1.bf16.msra.mxu0 0
    %956 = vmatprep.subr.bf16.mxu0 0
    %957 = vmatpush1.bf16.msra.mxu0 0
    %958 = vmatprep.subr.bf16.mxu0 0
    %959 = vmatpush1.bf16.msra.mxu0 0
    %960 = vmatprep.subr.bf16.mxu0 0
    %961 = vmatpush1.bf16.msra.mxu0 0
    %962 = vmatprep.subr.bf16.mxu0 0
    %963 = vmatpush1.bf16.msra.mxu0 0
    %964 = vmatprep.subr.bf16.mxu0 0
    %965 = vmatpush1.bf16.msra.mxu0 0
    %966 = vmatprep.subr.bf16.mxu0 0
    %967 = vmatpush1.bf16.msra.mxu0 0
    %968 = vmatprep.subr.bf16.mxu0 0
    %969 = vmatpush1.bf16.msra.mxu0 0
    %970 = vmatprep.subr.bf16.mxu0 0
    %971 = vmatpush1.bf16.msra.mxu0 0
    %972 = vmatprep.subr.bf16.mxu0 0
    %973 = vmatpush1.bf16.msra.mxu0 0
    %974 = vmatprep.subr.bf16.mxu0 0
    %975 = vmatpush1.bf16.msra.mxu0 0
    %976 = vmatprep.mubr.bf16.mxu0 0
    %977 = vmatmul.mubr.bf16.gmra.mrb[0].mxu0 %v942
    %v978 = vpop.f32.mrb[0].mxu0
    %v979 = vadd.f32 %v765, %v978
    %v980 = vpop.f32.mrb[0].mxu0
    %v981 = vadd.f32 %v769, %v980
    %v982 = vpop.f32.mrb[0].mxu0
    %v983 = vadd.f32 %v765, %v982
    %v984 = vpop.f32.mrb[0].mxu0
    %v985 = vadd.f32 %v769, %v984
    %986 = vdwg.mxu0
    %987 = vmatprep.subr.bf16.mxu0 %v888
    %988 = vmatpush1.bf16.msra.mxu0 %v887
    %989 = vmatprep.subr.bf16.mxu0 %v895
    %990 = vmatpush1.bf16.msra.mxu0 %v894
    %991 = vmatprep.subr.bf16.mxu0 %v902
    %992 = vmatpush1.bf16.msra.mxu0 %v901
    %993 = vmatprep.subr.bf16.mxu0 %v909
    %994 = vmatpush1.bf16.msra.mxu0 %v908
    %995 = vmatprep.subr.bf16.mxu0 0
    %996 = vmatpush1.bf16.msra.mxu0 0
    %997 = vmatprep.subr.bf16.mxu0 0
    %998 = vmatpush1.bf16.msra.mxu0 0
    %999 = vmatprep.subr.bf16.mxu0 0
    %1000 = vmatpush1.bf16.msra.mxu0 0
    %1001 = vmatprep.subr.bf16.mxu0 0
    %1002 = vmatpush1.bf16.msra.mxu0 0
    %1003 = vmatprep.subr.bf16.mxu0 0
    %1004 = vmatpush1.bf16.msra.mxu0 0
    %1005 = vmatprep.subr.bf16.mxu0 0
    %1006 = vmatpush1.bf16.msra.mxu0 0
    %1007 = vmatprep.subr.bf16.mxu0 0
    %1008 = vmatpush1.bf16.msra.mxu0 0
    %1009 = vmatprep.subr.bf16.mxu0 0
    %1010 = vmatpush1.bf16.msra.mxu0 0
    %1011 = vmatprep.subr.bf16.mxu0 0
    %1012 = vmatpush1.bf16.msra.mxu0 0
    %1013 = vmatprep.subr.bf16.mxu0 0
    %1014 = vmatpush1.bf16.msra.mxu0 0
    %1015 = vmatprep.subr.bf16.mxu0 0
    %1016 = vmatpush1.bf16.msra.mxu0 0
    %1017 = vmatprep.subr.bf16.mxu0 0
    %1018 = vmatpush1.bf16.msra.mxu0 0
    %1019 = vmatprep.mubr.bf16.mxu0 0
    %1020 = vmatmul.mubr.bf16.gmra.mrb[0].mxu0 %v942
    %v1021 = vpop.f32.mrb[0].mxu0
    %v1022 = vadd.f32 %v773, %v1021
    %v1023 = vpop.f32.mrb[0].mxu0
    %v1024 = vadd.f32 %v777, %v1023
    %v1025 = vpop.f32.mrb[0].mxu0
    %v1026 = vadd.f32 %v773, %v1025
    %v1027 = vpop.f32.mrb[0].mxu0
    %v1028 = vadd.f32 %v777, %v1027
    %1029 = vdwg.mxu0
    %1030 = vmatprep.subr.bf16.mxu0 %v890
    %1031 = vmatpush1.bf16.msra.mxu0 %v889
    %1032 = vmatprep.subr.bf16.mxu0 %v897
    %1033 = vmatpush1.bf16.msra.mxu0 %v896
    %1034 = vmatprep.subr.bf16.mxu0 %v904
    %1035 = vmatpush1.bf16.msra.mxu0 %v903
    %1036 = vmatprep.subr.bf16.mxu0 %v911
    %1037 = vmatpush1.bf16.msra.mxu0 %v910
    %1038 = vmatprep.subr.bf16.mxu0 0
    %1039 = vmatpush1.bf16.msra.mxu0 0
    %1040 = vmatprep.subr.bf16.mxu0 0
    %1041 = vmatpush1.bf16.msra.mxu0 0
    %1042 = vmatprep.subr.bf16.mxu0 0
    %1043 = vmatpush1.bf16.msra.mxu0 0
    %1044 = vmatprep.subr.bf16.mxu0 0
    %1045 = vmatpush1.bf16.msra.mxu0 0
    %1046 = vmatprep.subr.bf16.mxu0 0
    %1047 = vmatpush1.bf16.msra.mxu0 0
    %1048 = vmatprep.subr.bf16.mxu0 0
    %1049 = vmatpush1.bf16.msra.mxu0 0
    %1050 = vmatprep.subr.bf16.mxu0 0
    %1051 = vmatpush1.bf16.msra.mxu0 0
    %1052 = vmatprep.subr.bf16.mxu0 0
    %1053 = vmatpush1.bf16.msra.mxu0 0
    %1054 = vmatprep.subr.bf16.mxu0 0
    %1055 = vmatpush1.bf16.msra.mxu0 0
    %1056 = vmatprep.subr.bf16.mxu0 0
    %1057 = vmatpush1.bf16.msra.mxu0 0
    %1058 = vmatprep.subr.bf16.mxu0 0
    %1059 = vmatpush1.bf16.msra.mxu0 0
    %1060 = vmatprep.subr.bf16.mxu0 0
    %1061 = vmatpush1.bf16.msra.mxu0 0
    %1062 = vmatprep.mubr.bf16.mxu0 0
    %1063 = vmatmul.mubr.bf16.gmra.mrb[0].mxu0 %v942
    %v1064 = vpop.f32.mrb[0].mxu0
    %v1065 = vadd.f32 %v781, %v1064
    %v1066 = vpop.f32.mrb[0].mxu0
    %v1067 = vadd.f32 %v785, %v1066
    %v1068 = vpop.f32.mrb[0].mxu0
    %v1069 = vadd.f32 %v781, %v1068
    %v1070 = vpop.f32.mrb[0].mxu0
    %v1071 = vadd.f32 %v785, %v1070
    %1072 = vdwg.mxu0
    %1073 = vmatprep.subr.bf16.mxu0 0
    %1074 = vmatpush1.bf16.msra.mxu0 %v891
    %1075 = vmatprep.subr.bf16.mxu0 0
    %1076 = vmatpush1.bf16.msra.mxu0 %v898
    %1077 = vmatprep.subr.bf16.mxu0 0
    %1078 = vmatpush1.bf16.msra.mxu0 %v905
    %1079 = vmatprep.subr.bf16.mxu0 0
    %1080 = vmatpush1.bf16.msra.mxu0 %v912
    %1081 = vmatprep.subr.bf16.mxu0 0
    %1082 = vmatpush1.bf16.msra.mxu0 0
    %1083 = vmatprep.subr.bf16.mxu0 0
    %1084 = vmatpush1.bf16.msra.mxu0 0
    %1085 = vmatprep.subr.bf16.mxu0 0
    %1086 = vmatpush1.bf16.msra.mxu0 0
    %1087 = vmatprep.subr.bf16.mxu0 0
    %1088 = vmatpush1.bf16.msra.mxu0 0
    %1089 = vmatprep.subr.bf16.mxu0 0
    %1090 = vmatpush1.bf16.msra.mxu0 0
    %1091 = vmatprep.subr.bf16.mxu0 0
    %1092 = vmatpush1.bf16.msra.mxu0 0
    %1093 = vmatprep.subr.bf16.mxu0 0
    %1094 = vmatpush1.bf16.msra.mxu0 0
    %1095 = vmatprep.subr.bf16.mxu0 0
    %1096 = vmatpush1.bf16.msra.mxu0 0
    %1097 = vmatprep.subr.bf16.mxu0 0
    %1098 = vmatpush1.bf16.msra.mxu0 0
    %1099 = vmatprep.subr.bf16.mxu0 0
    %1100 = vmatpush1.bf16.msra.mxu0 0
    %1101 = vmatprep.subr.bf16.mxu0 0
    %1102 = vmatpush1.bf16.msra.mxu0 0
    %1103 = vmatprep.subr.bf16.mxu0 0
    %1104 = vmatpush1.bf16.msra.mxu0 0
    %1105 = vmatprep.mubr.bf16.mxu0 0
    %1106 = vmatmul.mubr.bf16.gmra.mrb[0].mxu0 %v942
    %v1107 = vpop.f32.mrb[0].mxu0
    %v1108 = vadd.f32 %v789, %v1107
    %v1109 = vpop.f32.mrb[0].mxu0
    %v1110 = vpop.f32.mrb[0].mxu0
    %v1111 = vadd.f32 %v789, %v1110
    %v1112 = vpop.f32.mrb[0].mxu0
    %1113 = vdwg.mxu0
    %v1114 = vpack.c.bf16 %v983, %v979
    %v1115 = vpack.c.bf16 %v985, %v981
    %v1116 = vpack.c.bf16 %v1026, %v1022
    %v1117 = vpack.c.bf16 %v1028, %v1024
    %v1118 = vpack.c.bf16 %v1069, %v1065
    %v1119 = vpack.c.bf16 %v1071, %v1067
    %v1120 = vpack.c.bf16 %v1111, %v1108
    %v1128 = vunpack.c.l.b16 %v1114
    %v1129 = vunpack.c.l.b16 %v1115
    %v1130 = vunpack.c.l.b16 %v1116
    %v1131 = vunpack.c.l.b16 %v1117
    %v1132 = vunpack.c.l.b16 %v1118
    %v1133 = vunpack.c.l.b16 %v1119
    %v1134 = vunpack.c.l.b16 %v1120
    %v1135 = vunpack.c.h.b16 %v1114
    %v1136 = vunpack.c.h.b16 %v1115
    %v1137 = vunpack.c.h.b16 %v1116
    %v1138 = vunpack.c.h.b16 %v1117
    %v1139 = vunpack.c.h.b16 %v1118
    %v1140 = vunpack.c.h.b16 %v1119
    %v1141 = vunpack.c.h.b16 %v1120
    %v1142 = vpack.c.b16 %v1129, %v1128
    %v1143 = vpack.c.b16 %v1131, %v1130
    %v1144 = vpack.c.b16 %v1133, %v1132
    %v1145 = vpack.c.b16 %v1134, %v1134
    %v1146 = vpack.c.b16 %v1136, %v1135
    %v1147 = vpack.c.b16 %v1138, %v1137
    %v1148 = vpack.c.b16 %v1140, %v1139
    %v1149 = vpack.c.b16 %v1141, %v1141
    %1158 = vst [vmem:[#allocation2] sm:$0xff] %v1142
    %1159 = vst [vmem:[#allocation2 + $0x8] sm:$0xff] %v1143
    %1160 = vst [vmem:[#allocation2 + $0x10] sm:$0xff] %v1144
    %vm1161 = vcmask 125952
    %1162 = vst.msk [vmem:[#allocation2 + $0x18] sm:$0xf] %vm1161, %v1145
    %1163 = vst [vmem:[#allocation2 + $0x1c] sm:$0xff] %v1146
    %1164 = vst [vmem:[#allocation2 + $0x24] sm:$0xff] %v1147
    %1165 = vst [vmem:[#allocation2 + $0x2c] sm:$0xff] %v1148
    %1166 = vst.msk [vmem:[#allocation2 + $0x34] sm:$0xf] %vm1161, %v1149
    // Predicated region
    $region30: #{simplenet_forward.1} parent=1 // pred_check
      _
    $region31: #{simplenet_forward.1} parent=1 // pred_check_branch
      %1168 = sbr.rel (0) target = $region33
    $region32: #{simplenet_forward.1} parent=1 // pred_region
      %s1170 = ssub.s32 896, 896
      %1171 = vsyncadd [#allocation3], %s1170
      %s1172 = sshll.u32 [#allocation2], 4
      %s1173 = int_to_ptr.vmem [resolvable:$true] %s1172
      %1178 = dma.vmem_to_hbm [thread:$0]  %s1173, 896, %s7, [#allocation3], 448, 448, 28
    $region33: #{simplenet_forward.1} parent=1 // pred_fallthru
      _
    // Predicated region
    $region34: #{simplenet_forward.1} parent=1 // pred_check
      _
    $region35: #{simplenet_forward.1} parent=1 // pred_check_branch
      %1180 = sbr.rel (0) target = $region37
    $region36: #{simplenet_forward.1} parent=1 // pred_region
      %1181 = dma.done [#allocation3], 896
    $region37: #{simplenet_forward.1} parent=1 // pred_fallthru
      _
    %1182 = vsyncpa [#allocation3], 1

</llo_original>
